<compile_context>
chip_gen: v7x
topology: tpu7x:2x2x1
jax: 0.10.0
libtpu: 0.0.40
codegen_flags: <defaults>
</compile_context>

<pallas_src>
import math

import jax
import jax.numpy as jnp
from jax import lax
from jax.experimental import pallas as pl
from jax.experimental.pallas import tpu as pltpu


def _round_up(x, m):
    return ((x + m - 1) // m) * m


def _pick_tm(m_full, cin, cout_p, wp, *, max_tm=2048, vmem_budget=16 * 1024 * 1024):
    """Largest lane-dense (multiple-of-128) spatial tile fitting the VMEM budget."""
    halo = 2 * wp + 2
    best = 128
    tm = 128
    while tm <= max_tm:
        step_bytes = (2 * cin * (tm + halo) * 2      # bf16 input slab, double-buffered
                      + 2 * cout_p * tm * 4          # f32 output tile, double-buffered
                      + 9 * cout_p * cin * 2         # bf16 weights (resident)
                      + cout_p * tm * 4)             # f32 accumulator
        if step_bytes <= vmem_budget:
            best = tm
        tm += 128
    return min(best, _round_up(m_full, 128))


def _make_conv_bn_kernel(wp, tm):
    """3x3 conv (in-kernel im2col via 9 shifted matmuls) + folded-BN bias add."""
    shifts = [kh * wp + kw for kh in range(3) for kw in range(3)]

    def kernel(x_ref, w_ref, bias_ref, out_ref):
        # x_ref   : (Cin, TM + 2*Wp + 2)  bf16   halo'd flattened input slab
        # w_ref   : (9, Cout_p, Cin)      bf16   per-tap weights, BN scale folded in
        # bias_ref: (Cout_p, 1)           f32    folded BN bias
        # out_ref : (Cout_p, TM)          f32    lane-dense (TM multiple of 128)
        x = x_ref[...]
        acc = jnp.zeros(out_ref.shape, jnp.float32)
        for tap, sh in enumerate(shifts):
            acc += jnp.dot(w_ref[tap], x[:, sh:sh + tm],
                           preferred_element_type=jnp.float32)
        out_ref[...] = (acc + bias_ref[...]).astype(out_ref.dtype)

    return kernel


def _maxpool2x2(x_nchw):
    n, c, h, w = x_nchw.shape
    return x_nchw.reshape(n, c, h // 2, 2, w // 2, 2).max(axis=(3, 5))


def _conv_bn_branch(x_nchw, w_oihw, bn_params, *, pad=1):
    """3x3 conv (stride 1, no bias) + inference-mode BatchNorm fused in one Pallas call."""
    n, cin, h, w = x_nchw.shape
    cout = w_oihw.shape[0]
    hp, wp = h + 2 * pad, w + 2 * pad
    cout_p = _round_up(cout, 8)

    # Fold inference-mode BN into per-channel scale/bias; scale goes into the
    # weights in f32 BEFORE the bf16 cast (kernel only adds bias).
    gamma, beta, mean, var, eps = bn_params
    scale = gamma / jnp.sqrt(var + eps)
    bias = beta - mean * scale
    w_taps = jnp.transpose(w_oihw, (2, 3, 0, 1)).reshape(9, cout, cin)   # (kh,kw) major
    w_taps = w_taps * scale[None, :, None]
    w_taps = jnp.pad(w_taps, ((0, 0), (0, cout_p - cout), (0, 0))).astype(jnp.bfloat16)
    bias_p = jnp.pad(bias, (0, cout_p - cout)).reshape(cout_p, 1).astype(jnp.float32)

    # Input: single bf16 cast + zero pad + flatten.  The conv output is computed
    # over the padded width Wp (2 junk columns per row, sliced off below) so every
    # tap is a constant shift of the flattened slab.
    m_full = h * wp
    tm = _pick_tm(m_full, cin, cout_p, wp)
    n_tiles = pl.cdiv(m_full, tm)
    m_pad = n_tiles * tm
    halo = 2 * wp + 2
    lhalo = tm + halo

    x_bf = jnp.pad(x_nchw.astype(jnp.bfloat16),
                   ((0, 0), (0, 0), (pad, pad), (pad, pad)))
    x_flat = x_bf.reshape(n, cin, hp * wp)
    x_flat = jnp.pad(x_flat, ((0, 0), (0, 0), (0, m_pad + halo - hp * wp)))
    # Overlapping halo'd windows (only the small halo is duplicated per tile),
    # so BlockSpec blocks are non-overlapping and in-kernel slices are static.
    x_tiles = jnp.stack([x_flat[:, :, t * tm:t * tm + lhalo] for t in range(n_tiles)],
                        axis=1)                                # (N, n_tiles, Cin, Lhalo)

    kernel = _make_conv_bn_kernel(wp, tm)

    out = pl.pallas_call(
        kernel,
        # TODO(synk): emit bf16 here if the consumer of x_h/x_l accepts bf16
        # (halves the output HBM writeback on this memory-bound kernel).
        out_shape=jax.ShapeDtypeStruct((n, cout_p, m_pad), jnp.float32),
        grid_spec=pltpu.PrefetchScalarGridSpec(
            num_scalar_prefetch=0,
            grid=(n, n_tiles),
            in_specs=[
                pl.BlockSpec((None, None, cin, lhalo), lambda b, t: (b, t, 0, 0)),
                pl.BlockSpec((9, cout_p, cin), lambda b, t: (0, 0, 0)),   # resident
                pl.BlockSpec((cout_p, 1), lambda b, t: (0, 0)),           # resident
            ],
            out_specs=pl.BlockSpec((None, cout_p, tm), lambda b, t: (b, 0, t)),
        ),
        compiler_params=pltpu.CompilerParams(
            dimension_semantics=("parallel", "parallel"),
            vmem_limit_bytes=32 * 1024 * 1024,
        ),
    )(x_tiles, w_taps, bias_p)

    # (N, Cout_p, M_pad) -> drop padded rows/lanes and the 2 junk columns -> NCHW.
    return out[:, :cout, :m_full].reshape(n, cout, h, wp)[:, :, :, :w]


def conv_bn0a_forward(x, w_h2h, w_h2l, bn_h, bn_l, *, pad=1):
    """Forward of Conv_BN0a: returns (x_h [NCHW], x_l [NCHW])."""
    # TODO(synk): at tiny sizes the two branches could be merged into one
    # pallas_call (branch grid axis + prefetched weight selection) to amortize
    # the per-launch fixed overhead.
    x_h = _conv_bn_branch(x, w_h2h, bn_h, pad=pad)
    x_l = _conv_bn_branch(_maxpool2x2(x), w_h2l, bn_l, pad=pad)
    return x_h, x_l


def _reference_forward(x, w_h2h, w_h2l, bn_h, bn_l, *, pad=1):
    """Pure-JAX reference with the same quantization choices as the kernel path
    (bf16 inputs, BN scale folded into weights before the bf16 cast, f32 accum)."""
    dn = ("NCHW", "OIHW", "NCHW")

    def branch(xb, wb, bn):
        gamma, beta, mean, var, eps = bn
        scale = gamma / jnp.sqrt(var + eps)
        bias = beta - mean * scale
        wf = (wb * scale[:, None, None, None]).astype(jnp.bfloat16)
        y = lax.conv_general_dilated(
            xb.astype(jnp.bfloat16), wf, (1, 1), [(pad, pad), (pad, pad)],
            dimension_numbers=dn, preferred_element_type=jnp.float32)
        return y + bias.reshape(1, -1, 1, 1)

    return branch(x, w_h2h, bn_h), branch(_maxpool2x2(x), w_h2l, bn_l)


if __name__ == "__main__":
    # Conv_BN0a(in_channels=8, out_channels=8, kernel_size=3,
    #           alpha_in=0.5, alpha_out=0.5, stride=1, padding=1, bias=False)
    in_channels, out_channels, ksize, alpha_in, alpha_out, pad = 8, 8, 3, 0.5, 0.5, 1
    cin_h = in_channels - int(alpha_in * in_channels)       # 4 (conv input channels)
    cout_h = out_channels - int(alpha_out * out_channels)   # 4 (high-freq out)
    cout_l = int(alpha_out * out_channels)                  # 4 (low-freq out)

    N, H, W = 2, 16, 16

    key = jax.random.PRNGKey(0)
    kx, kwh, kwl, kbh, kbl = jax.random.split(key, 5)
    x = jax.random.normal(kx, (N, cin_h, H, W), dtype=jnp.float32)

    fan = cin_h * ksize * ksize
    w_h2h = jax.random.normal(kwh, (cout_h, cin_h, ksize, ksize),
                              dtype=jnp.float32) / math.sqrt(fan)
    w_h2l = jax.random.normal(kwl, (cout_l, cin_h, ksize, ksize),
                              dtype=jnp.float32) / math.sqrt(fan)

    def make_bn(key, c):
        k1, k2, k3, k4 = jax.random.split(key, 4)
        gamma = jax.random.uniform(k1, (c,), minval=0.5, maxval=1.5)
        beta = 0.1 * jax.random.normal(k2, (c,))
        mean = 0.1 * jax.random.normal(k3, (c,))
        var = jax.random.uniform(k4, (c,), minval=0.5, maxval=1.5)
        return gamma, beta, mean, var, 1e-5

    # BatchNorm applied in inference mode (running stats folded to scale/bias).
    # TODO(synk): training-mode BN (batch statistics over the conv output) would
    # need a second reduction pass over the conv result and is not fused here.
    bn_h = make_bn(kbh, cout_h)
    bn_l = make_bn(kbl, cout_l)

    out_h, out_l = conv_bn0a_forward(x, w_h2h, w_h2l, bn_h, bn_l, pad=pad)
    out_h = jax.block_until_ready(out_h)
    out_l = jax.block_until_ready(out_l)
    assert out_h.shape == (N, cout_h, H, W)
    assert out_l.shape == (N, cout_l, H // 2, W // 2)

    ref_h, ref_l = _reference_forward(x, w_h2h, w_h2l, bn_h, bn_l, pad=pad)
    ref_h = jax.block_until_ready(ref_h)
    ref_l = jax.block_until_ready(ref_l)

    err_h = float(jnp.max(jnp.abs(out_h - ref_h)))
    err_l = float(jnp.max(jnp.abs(out_l - ref_l)))
    if err_h > 2e-3 or err_l > 2e-3:
        raise AssertionError(f"mismatch vs reference: err_h={err_h}, err_l={err_l}")

    print("KERNEL_OK")
</pallas_src>

<mosaic_0001>
module attributes {stable_mosaic.version = 11 : i64} {
  func.func @kernel(%arg0: i32, %arg1: i32, %arg2: memref<1x1x4x422xbf16, #tpu.memory_space<vmem>>, %arg3: memref<9x8x4xbf16, #tpu.memory_space<vmem>>, %arg4: memref<8x1xf32, #tpu.memory_space<vmem>>, %arg5: memref<1x8x384xf32, #tpu.memory_space<vmem>>) attributes {dimension_semantics = [#tpu.dimension_semantics<parallel>, #tpu.dimension_semantics<parallel>], iteration_bounds = array<i64: 2, 1>, scalar_prefetch = 0 : i64, scratch_operands = 0 : i64, tpu.core_type = #tpu.core_type<tc>, window_params = [{transform_indices = @transform_0, window_bounds = array<i64: 1, 1, 4, 422>}, {pipeline_mode = #tpu.pipeline_mode<synchronous>, transform_indices = @transform_1, window_bounds = array<i64: 9, 8, 4>}, {pipeline_mode = #tpu.pipeline_mode<synchronous>, transform_indices = @transform_2, window_bounds = array<i64: 8, 1>}, {transform_indices = @transform_3, window_bounds = array<i64: 1, 8, 384>}]} {
    %c0 = arith.constant 0 : index
    %c0_0 = arith.constant 0 : index
    %c0_1 = arith.constant 0 : index
    %c0_2 = arith.constant 0 : index
    %0 = vector.load %arg2[%c0, %c0_0, %c0_1, %c0_2] : memref<1x1x4x422xbf16, #tpu.memory_space<vmem>>, vector<1x1x4x422xbf16>
    %1 = vector.shape_cast %0 : vector<1x1x4x422xbf16> to vector<4x422xbf16>
    %cst = arith.constant 0.000000e+00 : f32
    %2 = vector.broadcast %cst : f32 to vector<8x384xf32>
    %c0_3 = arith.constant 0 : index
    %c0_4 = arith.constant 0 : index
    %c0_5 = arith.constant 0 : index
    %3 = vector.load %arg3[%c0_3, %c0_4, %c0_5] : memref<9x8x4xbf16, #tpu.memory_space<vmem>>, vector<1x8x4xbf16>
    %4 = vector.shape_cast %3 : vector<1x8x4xbf16> to vector<8x4xbf16>
    %5 = vector.extract_strided_slice %1 {offsets = [0, 0], sizes = [4, 384], strides = [1, 1]} : vector<4x422xbf16> to vector<4x384xbf16>
    %cst_6 = arith.constant dense<0.000000e+00> : vector<8x384xf32>
    %6 = tpu.matmul %4, %5, %cst_6 {dimension_numbers = #tpu.dot_dimension_numbers<[1], [0], [0], [1], [0, 0, 1, 1], [], []>} : vector<8x4xbf16>, vector<4x384xbf16>, vector<8x384xf32> -> vector<8x384xf32>
    %7 = arith.addf %2, %6 : vector<8x384xf32>
    %c1 = arith.constant 1 : index
    %c0_7 = arith.constant 0 : index
    %c0_8 = arith.constant 0 : index
    %8 = vector.load %arg3[%c1, %c0_7, %c0_8] : memref<9x8x4xbf16, #tpu.memory_space<vmem>>, vector<1x8x4xbf16>
    %9 = vector.shape_cast %8 : vector<1x8x4xbf16> to vector<8x4xbf16>
    %10 = vector.extract_strided_slice %1 {offsets = [0, 1], sizes = [4, 384], strides = [1, 1]} : vector<4x422xbf16> to vector<4x384xbf16>
    %cst_9 = arith.constant dense<0.000000e+00> : vector<8x384xf32>
    %11 = tpu.matmul %9, %10, %cst_9 {dimension_numbers = #tpu.dot_dimension_numbers<[1], [0], [0], [1], [0, 0, 1, 1], [], []>} : vector<8x4xbf16>, vector<4x384xbf16>, vector<8x384xf32> -> vector<8x384xf32>
    %12 = arith.addf %7, %11 : vector<8x384xf32>
    %c2 = arith.constant 2 : index
    %c0_10 = arith.constant 0 : index
    %c0_11 = arith.constant 0 : index
    %13 = vector.load %arg3[%c2, %c0_10, %c0_11] : memref<9x8x4xbf16, #tpu.memory_space<vmem>>, vector<1x8x4xbf16>
    %14 = vector.shape_cast %13 : vector<1x8x4xbf16> to vector<8x4xbf16>
    %15 = vector.extract_strided_slice %1 {offsets = [0, 2], sizes = [4, 384], strides = [1, 1]} : vector<4x422xbf16> to vector<4x384xbf16>
    %cst_12 = arith.constant dense<0.000000e+00> : vector<8x384xf32>
    %16 = tpu.matmul %14, %15, %cst_12 {dimension_numbers = #tpu.dot_dimension_numbers<[1], [0], [0], [1], [0, 0, 1, 1], [], []>} : vector<8x4xbf16>, vector<4x384xbf16>, vector<8x384xf32> -> vector<8x384xf32>
    %17 = arith.addf %12, %16 : vector<8x384xf32>
    %c3 = arith.constant 3 : index
    %c0_13 = arith.constant 0 : index
    %c0_14 = arith.constant 0 : index
    %18 = vector.load %arg3[%c3, %c0_13, %c0_14] : memref<9x8x4xbf16, #tpu.memory_space<vmem>>, vector<1x8x4xbf16>
    %19 = vector.shape_cast %18 : vector<1x8x4xbf16> to vector<8x4xbf16>
    %20 = vector.extract_strided_slice %1 {offsets = [0, 18], sizes = [4, 384], strides = [1, 1]} : vector<4x422xbf16> to vector<4x384xbf16>
    %cst_15 = arith.constant dense<0.000000e+00> : vector<8x384xf32>
    %21 = tpu.matmul %19, %20, %cst_15 {dimension_numbers = #tpu.dot_dimension_numbers<[1], [0], [0], [1], [0, 0, 1, 1], [], []>} : vector<8x4xbf16>, vector<4x384xbf16>, vector<8x384xf32> -> vector<8x384xf32>
    %22 = arith.addf %17, %21 : vector<8x384xf32>
    %c4 = arith.constant 4 : index
    %c0_16 = arith.constant 0 : index
    %c0_17 = arith.constant 0 : index
    %23 = vector.load %arg3[%c4, %c0_16, %c0_17] : memref<9x8x4xbf16, #tpu.memory_space<vmem>>, vector<1x8x4xbf16>
    %24 = vector.shape_cast %23 : vector<1x8x4xbf16> to vector<8x4xbf16>
    %25 = vector.extract_strided_slice %1 {offsets = [0, 19], sizes = [4, 384], strides = [1, 1]} : vector<4x422xbf16> to vector<4x384xbf16>
    %cst_18 = arith.constant dense<0.000000e+00> : vector<8x384xf32>
    %26 = tpu.matmul %24, %25, %cst_18 {dimension_numbers = #tpu.dot_dimension_numbers<[1], [0], [0], [1], [0, 0, 1, 1], [], []>} : vector<8x4xbf16>, vector<4x384xbf16>, vector<8x384xf32> -> vector<8x384xf32>
    %27 = arith.addf %22, %26 : vector<8x384xf32>
    %c5 = arith.constant 5 : index
    %c0_19 = arith.constant 0 : index
    %c0_20 = arith.constant 0 : index
    %28 = vector.load %arg3[%c5, %c0_19, %c0_20] : memref<9x8x4xbf16, #tpu.memory_space<vmem>>, vector<1x8x4xbf16>
    %29 = vector.shape_cast %28 : vector<1x8x4xbf16> to vector<8x4xbf16>
    %30 = vector.extract_strided_slice %1 {offsets = [0, 20], sizes = [4, 384], strides = [1, 1]} : vector<4x422xbf16> to vector<4x384xbf16>
    %cst_21 = arith.constant dense<0.000000e+00> : vector<8x384xf32>
    %31 = tpu.matmul %29, %30, %cst_21 {dimension_numbers = #tpu.dot_dimension_numbers<[1], [0], [0], [1], [0, 0, 1, 1], [], []>} : vector<8x4xbf16>, vector<4x384xbf16>, vector<8x384xf32> -> vector<8x384xf32>
    %32 = arith.addf %27, %31 : vector<8x384xf32>
    %c6 = arith.constant 6 : index
    %c0_22 = arith.constant 0 : index
    %c0_23 = arith.constant 0 : index
    %33 = vector.load %arg3[%c6, %c0_22, %c0_23] : memref<9x8x4xbf16, #tpu.memory_space<vmem>>, vector<1x8x4xbf16>
    %34 = vector.shape_cast %33 : vector<1x8x4xbf16> to vector<8x4xbf16>
    %35 = vector.extract_strided_slice %1 {offsets = [0, 36], sizes = [4, 384], strides = [1, 1]} : vector<4x422xbf16> to vector<4x384xbf16>
    %cst_24 = arith.constant dense<0.000000e+00> : vector<8x384xf32>
    %36 = tpu.matmul %34, %35, %cst_24 {dimension_numbers = #tpu.dot_dimension_numbers<[1], [0], [0], [1], [0, 0, 1, 1], [], []>} : vector<8x4xbf16>, vector<4x384xbf16>, vector<8x384xf32> -> vector<8x384xf32>
    %37 = arith.addf %32, %36 : vector<8x384xf32>
    %c7 = arith.constant 7 : index
    %c0_25 = arith.constant 0 : index
    %c0_26 = arith.constant 0 : index
    %38 = vector.load %arg3[%c7, %c0_25, %c0_26] : memref<9x8x4xbf16, #tpu.memory_space<vmem>>, vector<1x8x4xbf16>
    %39 = vector.shape_cast %38 : vector<1x8x4xbf16> to vector<8x4xbf16>
    %40 = vector.extract_strided_slice %1 {offsets = [0, 37], sizes = [4, 384], strides = [1, 1]} : vector<4x422xbf16> to vector<4x384xbf16>
    %cst_27 = arith.constant dense<0.000000e+00> : vector<8x384xf32>
    %41 = tpu.matmul %39, %40, %cst_27 {dimension_numbers = #tpu.dot_dimension_numbers<[1], [0], [0], [1], [0, 0, 1, 1], [], []>} : vector<8x4xbf16>, vector<4x384xbf16>, vector<8x384xf32> -> vector<8x384xf32>
    %42 = arith.addf %37, %41 : vector<8x384xf32>
    %c8 = arith.constant 8 : index
    %c0_28 = arith.constant 0 : index
    %c0_29 = arith.constant 0 : index
    %43 = vector.load %arg3[%c8, %c0_28, %c0_29] : memref<9x8x4xbf16, #tpu.memory_space<vmem>>, vector<1x8x4xbf16>
    %44 = vector.shape_cast %43 : vector<1x8x4xbf16> to vector<8x4xbf16>
    %45 = vector.extract_strided_slice %1 {offsets = [0, 38], sizes = [4, 384], strides = [1, 1]} : vector<4x422xbf16> to vector<4x384xbf16>
    %cst_30 = arith.constant dense<0.000000e+00> : vector<8x384xf32>
    %46 = tpu.matmul %44, %45, %cst_30 {dimension_numbers = #tpu.dot_dimension_numbers<[1], [0], [0], [1], [0, 0, 1, 1], [], []>} : vector<8x4xbf16>, vector<4x384xbf16>, vector<8x384xf32> -> vector<8x384xf32>
    %47 = arith.addf %42, %46 : vector<8x384xf32>
    %c0_31 = arith.constant 0 : index
    %c0_32 = arith.constant 0 : index
    %48 = vector.load %arg4[%c0_31, %c0_32] : memref<8x1xf32, #tpu.memory_space<vmem>>, vector<8x1xf32>
    %49 = vector.broadcast %48 : vector<8x1xf32> to vector<8x384xf32>
    %50 = arith.addf %47, %49 : vector<8x384xf32>
    %c0_33 = arith.constant 0 : index
    %c0_34 = arith.constant 0 : index
    %c0_35 = arith.constant 0 : index
    %51 = vector.load %arg5[%c0_33, %c0_34, %c0_35] : memref<1x8x384xf32, #tpu.memory_space<vmem>>, vector<1x8x384xf32>
    %52 = vector.shape_cast %51 : vector<1x8x384xf32> to vector<8x384xf32>
    %53 = vector.shape_cast %50 : vector<8x384xf32> to vector<1x8x384xf32>
    tpu.vector_store %arg5[%c0_33, %c0_34, %c0_35], %53 {strides = array<i32>} : memref<1x8x384xf32, #tpu.memory_space<vmem>>, vector<1x8x384xf32>,
    return
  }
  func.func @transform_0(%arg0: i32, %arg1: i32) -> (i32, i32, i32, i32) {
    %c0_i32 = arith.constant 0 : i32
    %c0_i32_0 = arith.constant 0 : i32
    %c0_i32_1 = arith.constant 0 : i32
    return %arg0, %arg1, %c0_i32, %c0_i32_0 : i32, i32, i32, i32
  }
  func.func @transform_1(%arg0: i32, %arg1: i32) -> (i32, i32, i32) {
    %c0_i32 = arith.constant 0 : i32
    %c0_i32_0 = arith.constant 0 : i32
    %c0_i32_1 = arith.constant 0 : i32
    %c0_i32_2 = arith.constant 0 : i32
    return %c0_i32, %c0_i32_0, %c0_i32_1 : i32, i32, i32
  }
  func.func @transform_2(%arg0: i32, %arg1: i32) -> (i32, i32) {
    %c0_i32 = arith.constant 0 : i32
    %c0_i32_0 = arith.constant 0 : i32
    %c0_i32_1 = arith.constant 0 : i32
    return %c0_i32, %c0_i32_0 : i32, i32
  }
  func.func @transform_3(%arg0: i32, %arg1: i32) -> (i32, i32, i32) {
    %c0_i32 = arith.constant 0 : i32
    %c0_i32_0 = arith.constant 0 : i32
    return %arg0, %c0_i32, %arg1 : i32, i32, i32
  }
}

</mosaic_0001>

<llo_original>
// kernel: tpu_custom_call.1
$region0: #{tpu_custom_call.1}
  #allocation0 [shape = 'u32[]', space=smem, size = 0x4, offset = 0x4, fixed_abs, tag = 'smem constant byte address 0x4 - core index']
  #allocation1 [shape = 'u32[144,128]{1,0:T(1,128)}', space=vmem, size = 0x12000, scoped, tag = 'internal scratch']
  %s0 = inlined_call_operand.vmem [shape: bf16[2,1,4,422], index: 0, kind: input, shape index: {}]
  %s1 = inlined_call_operand.vmem [shape: bf16[9,8,4], index: 1, kind: input, shape index: {}]
  %s2 = inlined_call_operand.vmem [shape: f32[8,1], index: 2, kind: input, shape index: {}]
  %s3 = inlined_call_operand.hbm [shape: f32[2,8,384], index: 3, kind: output, shape index: {}]
  %s4 = sld [smem:[#allocation0]]
  $region45: #{tpu_custom_call.1} parent=0
    _
  %s6 = ssub.s32 1, %s4
  %s7 = scalar_select 0, %s6, %s4
  $region1: #{tpu_custom_call.1} parent=0
    #allocation2 [shape = 'u8[24576]{0}', space=vmem, size = 0x6000, scoped, tag = 'output window, operand 0']
    #allocation3 [shape = 's32[2]{0}', space=sflag, size = 0x8, scoped, tag = 'scoped memory for tpu_custom_call.1']
    %8 = vsyncpa [#allocation3], 0
    %s9 = scalar_lea.sflag [#allocation3], 1
    %10 = vsyncpa %s9, 0
    loop: start=0, step=1, limit=4
    $region2: #{tpu_custom_call.1} parent=1 // loop_pre_header
      _
    $region3: #{tpu_custom_call.1} parent=1 // loop_header
      %s12 = sphi 0, %s16
      %p13 = scmp.ge.s32.totalorder %s12, 4
      %s19 = sphi 0, %s31
      %s20 = sphi 0, %s27
      %s21 = sphi 0, %s19
      %s22 = sphi 0, %s20
      %s23 = sphi 0, %s21
      %s24 = sphi 0, %s22
      %s36 = sphi 0, %s38
      %s39 = sphi 0, %s36
      %s40 = sphi 0, %s39
      %s56 = sphi 0, %s40
      %s60 = sphi 0, %s60
      %s62 = sphi 0, %s60
      %s63 = sphi 0, %s62
      %s77 = sphi 0, %s63
      %s81 = sphi 0, %s81
      %s83 = sphi 0, %s81
      %s84 = sphi 0, %s83
      %s98 = sphi 0, %s84
      %s106 = sphi 0, %s108
      %s109 = sphi 0, %s106
      %s110 = sphi 0, %s109
      %s126 = sphi 0, %s110
    $region4: #{tpu_custom_call.1} parent=1 // loop_header_branch
      %15 = sbr.rel (%p13) target = $region8
    $region5: #{tpu_custom_call.1} parent=1 // loop_body
      %s17 = ssub.s32 %s12, 1
      %s18 = ssub.s32 %s12, 2
      %s25 = sadd.s32 1, %s20
      %p26 = scmp.ge.s32.totalorder %s25, 1
      %s27 = scalar_select %p26, 0, %s25
      %s28 = sadd.s32 1, %s19
      %s29 = scalar_select %p26, %s28, %s19
      %p30 = scmp.ge.s32.totalorder %s29, 2
      %s31 = scalar_select %p30, 0, %s29
      %s32 = ssub.s32 %s19, %s31
      %s33 = ssub.s32 %s20, %s27
      %s34 = sor.u32 %s32, %s33
      %p35 = scmp.eq.s32.totalorder %s34, 0
      %s37 = sadd.s32 %s36, 1
      %s38 = scalar_select %p35, %s36, %s37
      %p41 = pneg %p35
      %p42 = scmp.eq.s32.totalorder %s12, 1
      %p43 = por %p41, %p42
      %p44 = scmp.ne.s32.totalorder %s36, %s39
      %p45 = scmp.eq.s32.totalorder %s12, 0
      %p46 = por %p44, %p45
      %p47 = scmp.ne.s32.totalorder %s36, %s39
      %p48 = scmp.eq.s32.totalorder %s17, 1
      %p49 = por %p47, %p48
      %p50 = scmp.ne.s32.totalorder %s39, %s40
      %p51 = scmp.eq.s32.totalorder %s17, 0
      %p52 = por %p50, %p51
      %p53 = scmp.ne.s32.totalorder %s39, %s40
      %p54 = scmp.eq.s32.totalorder %s18, 1
      %p55 = por %p53, %p54
      %p57 = scmp.ne.s32.totalorder %s40, %s56
      %p58 = scmp.eq.s32.totalorder %s18, 0
      %p59 = por %p57, %p58
      %s61 = sadd.s32 %s60, 1
      %p64 = scmp.eq.s32.totalorder %s12, 1
      %p65 = scmp.ne.s32.totalorder %s60, %s62
      %p66 = scmp.eq.s32.totalorder %s12, 0
      %p67 = por %p65, %p66
      %p68 = scmp.ne.s32.totalorder %s60, %s62
      %p69 = scmp.eq.s32.totalorder %s17, 1
      %p70 = por %p68, %p69
      %p71 = scmp.ne.s32.totalorder %s62, %s63
      %p72 = scmp.eq.s32.totalorder %s17, 0
      %p73 = por %p71, %p72
      %p74 = scmp.ne.s32.totalorder %s62, %s63
      %p75 = scmp.eq.s32.totalorder %s18, 1
      %p76 = por %p74, %p75
      %p78 = scmp.ne.s32.totalorder %s63, %s77
      %p79 = scmp.eq.s32.totalorder %s18, 0
      %p80 = por %p78, %p79
      %s82 = sadd.s32 %s81, 1
      %p85 = scmp.eq.s32.totalorder %s12, 1
      %p86 = scmp.ne.s32.totalorder %s81, %s83
      %p87 = scmp.eq.s32.totalorder %s12, 0
      %p88 = por %p86, %p87
      %p89 = scmp.ne.s32.totalorder %s81, %s83
      %p90 = scmp.eq.s32.totalorder %s17, 1
      %p91 = por %p89, %p90
      %p92 = scmp.ne.s32.totalorder %s83, %s84
      %p93 = scmp.eq.s32.totalorder %s17, 0
      %p94 = por %p92, %p93
      %p95 = scmp.ne.s32.totalorder %s83, %s84
      %p96 = scmp.eq.s32.totalorder %s18, 1
      %p97 = por %p95, %p96
      %p99 = scmp.ne.s32.totalorder %s84, %s98
      %p100 = scmp.eq.s32.totalorder %s18, 0
      %p101 = por %p99, %p100
      %s102 = ssub.s32 %s19, %s31
      %s103 = ssub.s32 %s20, %s27
      %s104 = sor.u32 %s102, %s103
      %p105 = scmp.eq.s32.totalorder %s104, 0
      %s107 = sadd.s32 %s106, 1
      %s108 = scalar_select %p105, %s106, %s107
      %p111 = pneg %p105
      %p112 = scmp.eq.s32.totalorder %s12, 1
      %p113 = por %p111, %p112
      %p114 = scmp.ne.s32.totalorder %s106, %s109
      %p115 = scmp.eq.s32.totalorder %s12, 0
      %p116 = por %p114, %p115
      %p117 = scmp.ne.s32.totalorder %s106, %s109
      %p118 = scmp.eq.s32.totalorder %s17, 1
      %p119 = por %p117, %p118
      %p120 = scmp.ne.s32.totalorder %s109, %s110
      %p121 = scmp.eq.s32.totalorder %s17, 0
      %p122 = por %p120, %p121
      %p123 = scmp.ne.s32.totalorder %s109, %s110
      %p124 = scmp.eq.s32.totalorder %s18, 1
      %p125 = por %p123, %p124
      %p127 = scmp.ne.s32.totalorder %s110, %s126
      %p128 = scmp.eq.s32.totalorder %s18, 0
      %p129 = por %p127, %p128
      %p130 = scmp.le.s32.totalorder 1, %s12
      %p131 = scmp.lt.s32.totalorder %s12, 3
      %p132 = pnand %p130, %p131
      %p133 = pneg %p132
      // Predicated region
      $region9: #{tpu_custom_call.1} parent=5 // pred_check
        _
      $region10: #{tpu_custom_call.1} parent=5 // pred_check_branch
        %135 = sbr.rel (%p132) target = $region12
      $region11: #{tpu_custom_call.1} parent=5 // pred_region
        %s136 = ssub.s32 %s12, 1
        // Predicated region
        $region13: #{tpu_custom_call.1} parent=11 // pred_check
          %p137 = pneg %p73
        $region14: #{tpu_custom_call.1} parent=11 // pred_check_branch
          %139 = sbr.rel (%p137) target = $region16
        $region15: #{tpu_custom_call.1} parent=11 // pred_region
          _
        $region16: #{tpu_custom_call.1} parent=11 // pred_fallthru
          _
        // Predicated region
        $region17: #{tpu_custom_call.1} parent=11 // pred_check
          %p140 = pneg %p94
        $region18: #{tpu_custom_call.1} parent=11 // pred_check_branch
          %142 = sbr.rel (%p140) target = $region20
        $region19: #{tpu_custom_call.1} parent=11 // pred_region
          _
        $region20: #{tpu_custom_call.1} parent=11 // pred_fallthru
          _
      $region12: #{tpu_custom_call.1} parent=5 // pred_fallthru
        _
      %p143 = scmp.lt.s32.totalorder %s12, 2
      // Predicated region
      $region21: #{tpu_custom_call.1} parent=5 // pred_check
        %p144 = pneg %p143
      $region22: #{tpu_custom_call.1} parent=5 // pred_check_branch
        %146 = sbr.rel (%p144) target = $region24
      $region23: #{tpu_custom_call.1} parent=5 // pred_region
        // Predicated region
        $region25: #{tpu_custom_call.1} parent=23 // pred_check
          %p147 = pneg %p46
        $region26: #{tpu_custom_call.1} parent=23 // pred_check_branch
          %149 = sbr.rel (%p147) target = $region28
        $region27: #{tpu_custom_call.1} parent=23 // pred_region
          %p150 = scmp.lt.s32.totalorder %s19, 1
          %s151 = scalar_select %p150, %s19, 1
          %p152 = scmp.lt.s32.totalorder %s20, 0
          %s153 = scalar_select %p152, %s20, 0
          %s154 = smul.addr %s153, 4
          %s155 = smul.addr %s151, 4
          %s156 = sadd.s32 %s154, %s155
          %s157 = smul.addr %s156, 2
          %s158 = scalar_lea.vmem %s0, %s157
        $region28: #{tpu_custom_call.1} parent=23 // pred_fallthru
          _
      $region24: #{tpu_custom_call.1} parent=5 // pred_fallthru
        _
      %p159 = scmp.le.s32.totalorder 1, %s12
      %p160 = scmp.lt.s32.totalorder %s12, 3
      %p161 = pnand %p159, %p160
      %p162 = pneg %p161
      // Predicated region
      $region29: #{tpu_custom_call.1} parent=5 // pred_check
        _
      $region30: #{tpu_custom_call.1} parent=5 // pred_check_branch
        %164 = sbr.rel (%p161) target = $region32
      $region31: #{tpu_custom_call.1} parent=5 // pred_region
        %s165 = ssub.s32 %s12, 1
        %p166 = scmp.lt.s32.totalorder %s21, 1
        %s167 = scalar_select %p166, %s21, 1
        %p168 = scmp.lt.s32.totalorder %s22, 0
        %s169 = scalar_select %p168, %s22, 0
        %s170 = smul.addr %s169, 4
        %s171 = smul.addr %s167, 4
        %s172 = sadd.s32 %s170, %s171
        %s173 = smul.addr %s172, 2
        %s174 = scalar_lea.vmem %s0, %s173
        %p175 = pneg %p52
        %p176 = pneg %p49
        %p177 = pneg %p73
        %p178 = pneg %p70
        %p179 = pneg %p94
        %p180 = pneg %p91
        %p181 = pneg %p122
        %p182 = pneg %p119
        %s183 = sand.u32 %s109, 1
        %s184 = scalar_lea.sflag [#allocation3], %s183
        %s185 = sand.u32 %s109, 1
        %s186 = smul.addr %s185, 24
        %s187 = scalar_lea.vmem [#allocation2], %s186
        %p188 = scmp.lt.s32.totalorder %s21, 1
        %s189 = scalar_select %p188, %s21, 1
        %p190 = scmp.lt.s32.totalorder %s22, 0
        %s191 = scalar_select %p190, %s22, 0
        %s192 = smul.addr %s191, 4
        %s193 = smul.addr %s189, 4
        %s194 = sadd.s32 %s192, %s193
        %s195 = smul.addr %s194, 2
        %s196 = scalar_lea.vmem %s0, %s195
        %s197 = smul.u32 3, %s22
        %v199 = vld [vmem:[%s196] sm:$0xff]
        %v200 = vld [vmem:[%s1] sm:$0xf]
        %s201 = scalar_lea.vmem %s1, 4
        %v202 = vld [vmem:[%s201] sm:$0xf]
        %v204 = vcombine.high %v199, %v199
        %v206 = vunpack.c.l.s4 1983009808
        %v207 = vunpack.c.0.s8 %v206
        %v208 = vlaneseq
        %v209 = vshrl.u32 %v208, 7
        %v210 = vsub.s32 %v207, %v209
        %v211 = vrot.slane %v199, %v210
        %v213 = vunpack.c.l.s4 1983009808
        %v214 = vunpack.c.0.s8 %v213
        %v215 = vlaneseq
        %v216 = vshrl.u32 %v215, 7
        %v217 = vsub.s32 %v214, %v216
        %v218 = vrot.slane %v204, %v217
        %v219 = vcombine.high %v211, %v211
        %v220 = vcombine.high %v218, %v218
        %221 = vrot.lane.b32.xlu0 %v211, 127
        %v222 = vpop.permute.xlu0 %221
        %223 = vrot.lane.b32.xlu0 %v219, 127
        %v224 = vpop.permute.xlu0 %223
        %225 = vrot.lane.b32.xlu0 %v218, 127
        %v226 = vpop.permute.xlu0 %225
        %227 = vrot.lane.b32.xlu0 %v220, 127
        %v228 = vpop.permute.xlu0 %227
        %vm229 = vcmask 1039360
        %v230 = vsel %vm229, %v222, %v224
        %v231 = vsel %vm229, %v224, %v226
        %v232 = vsel %vm229, %v226, %v228
        %vm233 = vcmask 31744
        %v235 = vsel %vm233, %v202, 0
        %vm237 = vcmask 1041408
        %v239 = vsel %vm237, %v230, 0
        %v242 = vsel %vm237, %v231, 0
        %v245 = vsel %vm237, %v232, 0
        %247 = vmatprep.subr.bf16.mxu0 %v242
        %248 = vmatpush1.bf16.msra.mxu0 %v239
        %249 = vmatprep.subr.bf16.mxu0 0
        %250 = vmatpush1.bf16.msra.mxu0 0
        %251 = vmatprep.subr.bf16.mxu0 0
        %252 = vmatpush1.bf16.msra.mxu0 0
        %253 = vmatprep.subr.bf16.mxu0 0
        %254 = vmatpush1.bf16.msra.mxu0 0
        %255 = vmatprep.subr.bf16.mxu0 0
        %256 = vmatpush1.bf16.msra.mxu0 0
        %257 = vmatprep.subr.bf16.mxu0 0
        %258 = vmatpush1.bf16.msra.mxu0 0
        %259 = vmatprep.subr.bf16.mxu0 0
        %260 = vmatpush1.bf16.msra.mxu0 0
        %261 = vmatprep.subr.bf16.mxu0 0
        %262 = vmatpush1.bf16.msra.mxu0 0
        %263 = vmatprep.subr.bf16.mxu0 0
        %264 = vmatpush1.bf16.msra.mxu0 0
        %265 = vmatprep.subr.bf16.mxu0 0
        %266 = vmatpush1.bf16.msra.mxu0 0
        %267 = vmatprep.subr.bf16.mxu0 0
        %268 = vmatpush1.bf16.msra.mxu0 0
        %269 = vmatprep.subr.bf16.mxu0 0
        %270 = vmatpush1.bf16.msra.mxu0 0
        %271 = vmatprep.subr.bf16.mxu0 0
        %272 = vmatpush1.bf16.msra.mxu0 0
        %273 = vmatprep.subr.bf16.mxu0 0
        %274 = vmatpush1.bf16.msra.mxu0 0
        %275 = vmatprep.subr.bf16.mxu0 0
        %276 = vmatpush1.bf16.msra.mxu0 0
        %277 = vmatprep.subr.bf16.mxu0 0
        %278 = vmatpush1.bf16.msra.mxu0 0
        %279 = vmatprep.mubr.bf16.mxu0 0
        %280 = vmatmul.mubr.bf16.gmra.mrb[0].mxu0 %v235
        %v281 = vpop.f32.mrb[0].mxu0
        %v282 = vadd.f32 0.0, %v281
        %v283 = vpop.f32.mrb[0].mxu0
        %v284 = vadd.f32 0.0, %v283
        %v285 = vpop.f32.mrb[0].mxu0
        %v286 = vpop.f32.mrb[0].mxu0
        %287 = vdwg.mxu0
        %288 = vmatprep.subr.bf16.mxu0 0
        %289 = vmatpush1.bf16.msra.mxu0 %v245
        %290 = vmatprep.subr.bf16.mxu0 0
        %291 = vmatpush1.bf16.msra.mxu0 0
        %292 = vmatprep.subr.bf16.mxu0 0
        %293 = vmatpush1.bf16.msra.mxu0 0
        %294 = vmatprep.subr.bf16.mxu0 0
        %295 = vmatpush1.bf16.msra.mxu0 0
        %296 = vmatprep.subr.bf16.mxu0 0
        %297 = vmatpush1.bf16.msra.mxu0 0
        %298 = vmatprep.subr.bf16.mxu0 0
        %299 = vmatpush1.bf16.msra.mxu0 0
        %300 = vmatprep.subr.bf16.mxu0 0
        %301 = vmatpush1.bf16.msra.mxu0 0
        %302 = vmatprep.subr.bf16.mxu0 0
        %303 = vmatpush1.bf16.msra.mxu0 0
        %304 = vmatprep.subr.bf16.mxu0 0
        %305 = vmatpush1.bf16.msra.mxu0 0
        %306 = vmatprep.subr.bf16.mxu0 0
        %307 = vmatpush1.bf16.msra.mxu0 0
        %308 = vmatprep.subr.bf16.mxu0 0
        %309 = vmatpush1.bf16.msra.mxu0 0
        %310 = vmatprep.subr.bf16.mxu0 0
        %311 = vmatpush1.bf16.msra.mxu0 0
        %312 = vmatprep.subr.bf16.mxu0 0
        %313 = vmatpush1.bf16.msra.mxu0 0
        %314 = vmatprep.subr.bf16.mxu0 0
        %315 = vmatpush1.bf16.msra.mxu0 0
        %316 = vmatprep.subr.bf16.mxu0 0
        %317 = vmatpush1.bf16.msra.mxu0 0
        %318 = vmatprep.subr.bf16.mxu0 0
        %319 = vmatpush1.bf16.msra.mxu0 0
        %320 = vmatprep.mubr.bf16.mxu0 0
        %321 = vmatmul.mubr.bf16.gmra.mrb[0].mxu0 %v235
        %v322 = vpop.f32.mrb[0].mxu0
        %v323 = vadd.f32 0.0, %v322
        %v324 = vpop.f32.mrb[0].mxu0
        %v325 = vpop.f32.mrb[0].mxu0
        %v326 = vpop.f32.mrb[0].mxu0
        %327 = vdwg.mxu0
        %v329 = vsel %vm233, %v200, 0
        %v332 = vsel %vm237, %v211, 0
        %v335 = vsel %vm237, %v219, 0
        %v338 = vsel %vm237, %v218, 0
        %340 = vmatprep.subr.bf16.mxu0 %v335
        %341 = vmatpush1.bf16.msra.mxu0 %v332
        %342 = vmatprep.subr.bf16.mxu0 0
        %343 = vmatpush1.bf16.msra.mxu0 0
        %344 = vmatprep.subr.bf16.mxu0 0
        %345 = vmatpush1.bf16.msra.mxu0 0
        %346 = vmatprep.subr.bf16.mxu0 0
        %347 = vmatpush1.bf16.msra.mxu0 0
        %348 = vmatprep.subr.bf16.mxu0 0
        %349 = vmatpush1.bf16.msra.mxu0 0
        %350 = vmatprep.subr.bf16.mxu0 0
        %351 = vmatpush1.bf16.msra.mxu0 0
        %352 = vmatprep.subr.bf16.mxu0 0
        %353 = vmatpush1.bf16.msra.mxu0 0
        %354 = vmatprep.subr.bf16.mxu0 0
        %355 = vmatpush1.bf16.msra.mxu0 0
        %356 = vmatprep.subr.bf16.mxu0 0
        %357 = vmatpush1.bf16.msra.mxu0 0
        %358 = vmatprep.subr.bf16.mxu0 0
        %359 = vmatpush1.bf16.msra.mxu0 0
        %360 = vmatprep.subr.bf16.mxu0 0
        %361 = vmatpush1.bf16.msra.mxu0 0
        %362 = vmatprep.subr.bf16.mxu0 0
        %363 = vmatpush1.bf16.msra.mxu0 0
        %364 = vmatprep.subr.bf16.mxu0 0
        %365 = vmatpush1.bf16.msra.mxu0 0
        %366 = vmatprep.subr.bf16.mxu0 0
        %367 = vmatpush1.bf16.msra.mxu0 0
        %368 = vmatprep.subr.bf16.mxu0 0
        %369 = vmatpush1.bf16.msra.mxu0 0
        %370 = vmatprep.subr.bf16.mxu0 0
        %371 = vmatpush1.bf16.msra.mxu0 0
        %372 = vmatprep.mubr.bf16.mxu0 0
        %373 = vmatmul.mubr.bf16.gmra.mrb[0].mxu0 %v329
        %v374 = vpop.f32.mrb[0].mxu0
        %v375 = vadd.f32 %v282, %v374
        %v376 = vpop.f32.mrb[0].mxu0
        %v377 = vadd.f32 %v284, %v376
        %v378 = vpop.f32.mrb[0].mxu0
        %v379 = vpop.f32.mrb[0].mxu0
        %380 = vdwg.mxu0
        %381 = vmatprep.subr.bf16.mxu0 0
        %382 = vmatpush1.bf16.msra.mxu0 %v338
        %383 = vmatprep.subr.bf16.mxu0 0
        %384 = vmatpush1.bf16.msra.mxu0 0
        %385 = vmatprep.subr.bf16.mxu0 0
        %386 = vmatpush1.bf16.msra.mxu0 0
        %387 = vmatprep.subr.bf16.mxu0 0
        %388 = vmatpush1.bf16.msra.mxu0 0
        %389 = vmatprep.subr.bf16.mxu0 0
        %390 = vmatpush1.bf16.msra.mxu0 0
        %391 = vmatprep.subr.bf16.mxu0 0
        %392 = vmatpush1.bf16.msra.mxu0 0
        %393 = vmatprep.subr.bf16.mxu0 0
        %394 = vmatpush1.bf16.msra.mxu0 0
        %395 = vmatprep.subr.bf16.mxu0 0
        %396 = vmatpush1.bf16.msra.mxu0 0
        %397 = vmatprep.subr.bf16.mxu0 0
        %398 = vmatpush1.bf16.msra.mxu0 0
        %399 = vmatprep.subr.bf16.mxu0 0
        %400 = vmatpush1.bf16.msra.mxu0 0
        %401 = vmatprep.subr.bf16.mxu0 0
        %402 = vmatpush1.bf16.msra.mxu0 0
        %403 = vmatprep.subr.bf16.mxu0 0
        %404 = vmatpush1.bf16.msra.mxu0 0
        %405 = vmatprep.subr.bf16.mxu0 0
        %406 = vmatpush1.bf16.msra.mxu0 0
        %407 = vmatprep.subr.bf16.mxu0 0
        %408 = vmatpush1.bf16.msra.mxu0 0
        %409 = vmatprep.subr.bf16.mxu0 0
        %410 = vmatpush1.bf16.msra.mxu0 0
        %411 = vmatprep.subr.bf16.mxu0 0
        %412 = vmatpush1.bf16.msra.mxu0 0
        %413 = vmatprep.mubr.bf16.mxu0 0
        %414 = vmatmul.mubr.bf16.gmra.mrb[0].mxu0 %v329
        %v415 = vpop.f32.mrb[0].mxu0
        %v416 = vadd.f32 %v323, %v415
        %v417 = vpop.f32.mrb[0].mxu0
        %v418 = vpop.f32.mrb[0].mxu0
        %v419 = vpop.f32.mrb[0].mxu0
        %420 = vdwg.mxu0
        %s421 = scalar_lea.vmem %s1, 8
        %v422 = vld [vmem:[%s421] sm:$0xf]
        %423 = vrot.lane.b32.xlu0 %v211, 126
        %v424 = vpop.permute.xlu0 %423
        %425 = vrot.lane.b32.xlu0 %v219, 126
        %v426 = vpop.permute.xlu0 %425
        %427 = vrot.lane.b32.xlu0 %v218, 126
        %v428 = vpop.permute.xlu0 %427
        %429 = vrot.lane.b32.xlu0 %v220, 126
        %v430 = vpop.permute.xlu0 %429
        %vm431 = vcmask 1031168
        %v432 = vsel %vm431, %v424, %v426
        %v433 = vsel %vm431, %v426, %v428
        %v434 = vsel %vm431, %v428, %v430
        %v436 = vsel %vm233, %v422, 0
        %v439 = vsel %vm237, %v432, 0
        %v442 = vsel %vm237, %v433, 0
        %v445 = vsel %vm237, %v434, 0
        %447 = vmatprep.subr.bf16.mxu0 %v442
        %448 = vmatpush1.bf16.msra.mxu0 %v439
        %449 = vmatprep.subr.bf16.mxu0 0
        %450 = vmatpush1.bf16.msra.mxu0 0
        %451 = vmatprep.subr.bf16.mxu0 0
        %452 = vmatpush1.bf16.msra.mxu0 0
        %453 = vmatprep.subr.bf16.mxu0 0
        %454 = vmatpush1.bf16.msra.mxu0 0
        %455 = vmatprep.subr.bf16.mxu0 0
        %456 = vmatpush1.bf16.msra.mxu0 0
        %457 = vmatprep.subr.bf16.mxu0 0
        %458 = vmatpush1.bf16.msra.mxu0 0
        %459 = vmatprep.subr.bf16.mxu0 0
        %460 = vmatpush1.bf16.msra.mxu0 0
        %461 = vmatprep.subr.bf16.mxu0 0
        %462 = vmatpush1.bf16.msra.mxu0 0
        %463 = vmatprep.subr.bf16.mxu0 0
        %464 = vmatpush1.bf16.msra.mxu0 0
        %465 = vmatprep.subr.bf16.mxu0 0
        %466 = vmatpush1.bf16.msra.mxu0 0
        %467 = vmatprep.subr.bf16.mxu0 0
        %468 = vmatpush1.bf16.msra.mxu0 0
        %469 = vmatprep.subr.bf16.mxu0 0
        %470 = vmatpush1.bf16.msra.mxu0 0
        %471 = vmatprep.subr.bf16.mxu0 0
        %472 = vmatpush1.bf16.msra.mxu0 0
        %473 = vmatprep.subr.bf16.mxu0 0
        %474 = vmatpush1.bf16.msra.mxu0 0
        %475 = vmatprep.subr.bf16.mxu0 0
        %476 = vmatpush1.bf16.msra.mxu0 0
        %477 = vmatprep.subr.bf16.mxu0 0
        %478 = vmatpush1.bf16.msra.mxu0 0
        %479 = vmatprep.mubr.bf16.mxu0 0
        %480 = vmatmul.mubr.bf16.gmra.mrb[0].mxu0 %v436
        %v481 = vpop.f32.mrb[0].mxu0
        %v482 = vadd.f32 0.0, %v481
        %v483 = vpop.f32.mrb[0].mxu0
        %v484 = vadd.f32 0.0, %v483
        %v485 = vpop.f32.mrb[0].mxu0
        %v486 = vpop.f32.mrb[0].mxu0
        %487 = vdwg.mxu0
        %488 = vmatprep.subr.bf16.mxu0 0
        %489 = vmatpush1.bf16.msra.mxu0 %v445
        %490 = vmatprep.subr.bf16.mxu0 0
        %491 = vmatpush1.bf16.msra.mxu0 0
        %492 = vmatprep.subr.bf16.mxu0 0
        %493 = vmatpush1.bf16.msra.mxu0 0
        %494 = vmatprep.subr.bf16.mxu0 0
        %495 = vmatpush1.bf16.msra.mxu0 0
        %496 = vmatprep.subr.bf16.mxu0 0
        %497 = vmatpush1.bf16.msra.mxu0 0
        %498 = vmatprep.subr.bf16.mxu0 0
        %499 = vmatpush1.bf16.msra.mxu0 0
        %500 = vmatprep.subr.bf16.mxu0 0
        %501 = vmatpush1.bf16.msra.mxu0 0
        %502 = vmatprep.subr.bf16.mxu0 0
        %503 = vmatpush1.bf16.msra.mxu0 0
        %504 = vmatprep.subr.bf16.mxu0 0
        %505 = vmatpush1.bf16.msra.mxu0 0
        %506 = vmatprep.subr.bf16.mxu0 0
        %507 = vmatpush1.bf16.msra.mxu0 0
        %508 = vmatprep.subr.bf16.mxu0 0
        %509 = vmatpush1.bf16.msra.mxu0 0
        %510 = vmatprep.subr.bf16.mxu0 0
        %511 = vmatpush1.bf16.msra.mxu0 0
        %512 = vmatprep.subr.bf16.mxu0 0
        %513 = vmatpush1.bf16.msra.mxu0 0
        %514 = vmatprep.subr.bf16.mxu0 0
        %515 = vmatpush1.bf16.msra.mxu0 0
        %516 = vmatprep.subr.bf16.mxu0 0
        %517 = vmatpush1.bf16.msra.mxu0 0
        %518 = vmatprep.subr.bf16.mxu0 0
        %519 = vmatpush1.bf16.msra.mxu0 0
        %520 = vmatprep.mubr.bf16.mxu0 0
        %521 = vmatmul.mubr.bf16.gmra.mrb[0].mxu0 %v436
        %v522 = vpop.f32.mrb[0].mxu0
        %v523 = vadd.f32 0.0, %v522
        %v524 = vpop.f32.mrb[0].mxu0
        %v525 = vpop.f32.mrb[0].mxu0
        %v526 = vpop.f32.mrb[0].mxu0
        %527 = vdwg.mxu0
        %v528 = vadd.f32 %v375, %v482
        %v529 = vadd.f32 %v377, %v484
        %v530 = vadd.f32 %v416, %v523
        %s531 = scalar_lea.vmem %s1, 12
        %v532 = vld [vmem:[%s531] sm:$0xf]
        %533 = vrot.lane.b32.xlu0 %v211, 110
        %v534 = vpop.permute.xlu0 %533
        %535 = vrot.lane.b32.xlu0 %v219, 110
        %v536 = vpop.permute.xlu0 %535
        %537 = vrot.lane.b32.xlu0 %v218, 110
        %v538 = vpop.permute.xlu0 %537
        %539 = vrot.lane.b32.xlu0 %v220, 110
        %v540 = vpop.permute.xlu0 %539
        %vm541 = vcmask 900096
        %v542 = vsel %vm541, %v534, %v536
        %v543 = vsel %vm541, %v536, %v538
        %v544 = vsel %vm541, %v538, %v540
        %v546 = vsel %vm233, %v532, 0
        %v549 = vsel %vm237, %v542, 0
        %v552 = vsel %vm237, %v543, 0
        %v555 = vsel %vm237, %v544, 0
        %557 = vmatprep.subr.bf16.mxu0 %v552
        %558 = vmatpush1.bf16.msra.mxu0 %v549
        %559 = vmatprep.subr.bf16.mxu0 0
        %560 = vmatpush1.bf16.msra.mxu0 0
        %561 = vmatprep.subr.bf16.mxu0 0
        %562 = vmatpush1.bf16.msra.mxu0 0
        %563 = vmatprep.subr.bf16.mxu0 0
        %564 = vmatpush1.bf16.msra.mxu0 0
        %565 = vmatprep.subr.bf16.mxu0 0
        %566 = vmatpush1.bf16.msra.mxu0 0
        %567 = vmatprep.subr.bf16.mxu0 0
        %568 = vmatpush1.bf16.msra.mxu0 0
        %569 = vmatprep.subr.bf16.mxu0 0
        %570 = vmatpush1.bf16.msra.mxu0 0
        %571 = vmatprep.subr.bf16.mxu0 0
        %572 = vmatpush1.bf16.msra.mxu0 0
        %573 = vmatprep.subr.bf16.mxu0 0
        %574 = vmatpush1.bf16.msra.mxu0 0
        %575 = vmatprep.subr.bf16.mxu0 0
        %576 = vmatpush1.bf16.msra.mxu0 0
        %577 = vmatprep.subr.bf16.mxu0 0
        %578 = vmatpush1.bf16.msra.mxu0 0
        %579 = vmatprep.subr.bf16.mxu0 0
        %580 = vmatpush1.bf16.msra.mxu0 0
        %581 = vmatprep.subr.bf16.mxu0 0
        %582 = vmatpush1.bf16.msra.mxu0 0
        %583 = vmatprep.subr.bf16.mxu0 0
        %584 = vmatpush1.bf16.msra.mxu0 0
        %585 = vmatprep.subr.bf16.mxu0 0
        %586 = vmatpush1.bf16.msra.mxu0 0
        %587 = vmatprep.subr.bf16.mxu0 0
        %588 = vmatpush1.bf16.msra.mxu0 0
        %589 = vmatprep.mubr.bf16.mxu0 0
        %590 = vmatmul.mubr.bf16.gmra.mrb[0].mxu0 %v546
        %v591 = vpop.f32.mrb[0].mxu0
        %v592 = vadd.f32 0.0, %v591
        %v593 = vpop.f32.mrb[0].mxu0
        %v594 = vadd.f32 0.0, %v593
        %v595 = vpop.f32.mrb[0].mxu0
        %v596 = vpop.f32.mrb[0].mxu0
        %597 = vdwg.mxu0
        %598 = vmatprep.subr.bf16.mxu0 0
        %599 = vmatpush1.bf16.msra.mxu0 %v555
        %600 = vmatprep.subr.bf16.mxu0 0
        %601 = vmatpush1.bf16.msra.mxu0 0
        %602 = vmatprep.subr.bf16.mxu0 0
        %603 = vmatpush1.bf16.msra.mxu0 0
        %604 = vmatprep.subr.bf16.mxu0 0
        %605 = vmatpush1.bf16.msra.mxu0 0
        %606 = vmatprep.subr.bf16.mxu0 0
        %607 = vmatpush1.bf16.msra.mxu0 0
        %608 = vmatprep.subr.bf16.mxu0 0
        %609 = vmatpush1.bf16.msra.mxu0 0
        %610 = vmatprep.subr.bf16.mxu0 0
        %611 = vmatpush1.bf16.msra.mxu0 0
        %612 = vmatprep.subr.bf16.mxu0 0
        %613 = vmatpush1.bf16.msra.mxu0 0
        %614 = vmatprep.subr.bf16.mxu0 0
        %615 = vmatpush1.bf16.msra.mxu0 0
        %616 = vmatprep.subr.bf16.mxu0 0
        %617 = vmatpush1.bf16.msra.mxu0 0
        %618 = vmatprep.subr.bf16.mxu0 0
        %619 = vmatpush1.bf16.msra.mxu0 0
        %620 = vmatprep.subr.bf16.mxu0 0
        %621 = vmatpush1.bf16.msra.mxu0 0
        %622 = vmatprep.subr.bf16.mxu0 0
        %623 = vmatpush1.bf16.msra.mxu0 0
        %624 = vmatprep.subr.bf16.mxu0 0
        %625 = vmatpush1.bf16.msra.mxu0 0
        %626 = vmatprep.subr.bf16.mxu0 0
        %627 = vmatpush1.bf16.msra.mxu0 0
        %628 = vmatprep.subr.bf16.mxu0 0
        %629 = vmatpush1.bf16.msra.mxu0 0
        %630 = vmatprep.mubr.bf16.mxu0 0
        %631 = vmatmul.mubr.bf16.gmra.mrb[0].mxu0 %v546
        %v632 = vpop.f32.mrb[0].mxu0
        %v633 = vadd.f32 0.0, %v632
        %v634 = vpop.f32.mrb[0].mxu0
        %v635 = vpop.f32.mrb[0].mxu0
        %v636 = vpop.f32.mrb[0].mxu0
        %637 = vdwg.mxu0
        %v638 = vadd.f32 %v528, %v592
        %v639 = vadd.f32 %v529, %v594
        %v640 = vadd.f32 %v530, %v633
        %s641 = scalar_lea.vmem %s1, 16
        %v642 = vld [vmem:[%s641] sm:$0xf]
        %643 = vrot.lane.b32.xlu0 %v211, 109
        %v644 = vpop.permute.xlu0 %643
        %645 = vrot.lane.b32.xlu0 %v219, 109
        %v646 = vpop.permute.xlu0 %645
        %647 = vrot.lane.b32.xlu0 %v218, 109
        %v648 = vpop.permute.xlu0 %647
        %649 = vrot.lane.b32.xlu0 %v220, 109
        %v650 = vpop.permute.xlu0 %649
        %vm651 = vcmask 891904
        %v652 = vsel %vm651, %v644, %v646
        %v653 = vsel %vm651, %v646, %v648
        %v654 = vsel %vm651, %v648, %v650
        %v656 = vsel %vm233, %v642, 0
        %v659 = vsel %vm237, %v652, 0
        %v662 = vsel %vm237, %v653, 0
        %v665 = vsel %vm237, %v654, 0
        %667 = vmatprep.subr.bf16.mxu0 %v662
        %668 = vmatpush1.bf16.msra.mxu0 %v659
        %669 = vmatprep.subr.bf16.mxu0 0
        %670 = vmatpush1.bf16.msra.mxu0 0
        %671 = vmatprep.subr.bf16.mxu0 0
        %672 = vmatpush1.bf16.msra.mxu0 0
        %673 = vmatprep.subr.bf16.mxu0 0
        %674 = vmatpush1.bf16.msra.mxu0 0
        %675 = vmatprep.subr.bf16.mxu0 0
        %676 = vmatpush1.bf16.msra.mxu0 0
        %677 = vmatprep.subr.bf16.mxu0 0
        %678 = vmatpush1.bf16.msra.mxu0 0
        %679 = vmatprep.subr.bf16.mxu0 0
        %680 = vmatpush1.bf16.msra.mxu0 0
        %681 = vmatprep.subr.bf16.mxu0 0
        %682 = vmatpush1.bf16.msra.mxu0 0
        %683 = vmatprep.subr.bf16.mxu0 0
        %684 = vmatpush1.bf16.msra.mxu0 0
        %685 = vmatprep.subr.bf16.mxu0 0
        %686 = vmatpush1.bf16.msra.mxu0 0
        %687 = vmatprep.subr.bf16.mxu0 0
        %688 = vmatpush1.bf16.msra.mxu0 0
        %689 = vmatprep.subr.bf16.mxu0 0
        %690 = vmatpush1.bf16.msra.mxu0 0
        %691 = vmatprep.subr.bf16.mxu0 0
        %692 = vmatpush1.bf16.msra.mxu0 0
        %693 = vmatprep.subr.bf16.mxu0 0
        %694 = vmatpush1.bf16.msra.mxu0 0
        %695 = vmatprep.subr.bf16.mxu0 0
        %696 = vmatpush1.bf16.msra.mxu0 0
        %697 = vmatprep.subr.bf16.mxu0 0
        %698 = vmatpush1.bf16.msra.mxu0 0
        %699 = vmatprep.mubr.bf16.mxu0 0
        %700 = vmatmul.mubr.bf16.gmra.mrb[0].mxu0 %v656
        %v701 = vpop.f32.mrb[0].mxu0
        %v702 = vadd.f32 0.0, %v701
        %v703 = vpop.f32.mrb[0].mxu0
        %v704 = vadd.f32 0.0, %v703
        %v705 = vpop.f32.mrb[0].mxu0
        %v706 = vpop.f32.mrb[0].mxu0
        %707 = vdwg.mxu0
        %708 = vmatprep.subr.bf16.mxu0 0
        %709 = vmatpush1.bf16.msra.mxu0 %v665
        %710 = vmatprep.subr.bf16.mxu0 0
        %711 = vmatpush1.bf16.msra.mxu0 0
        %712 = vmatprep.subr.bf16.mxu0 0
        %713 = vmatpush1.bf16.msra.mxu0 0
        %714 = vmatprep.subr.bf16.mxu0 0
        %715 = vmatpush1.bf16.msra.mxu0 0
        %716 = vmatprep.subr.bf16.mxu0 0
        %717 = vmatpush1.bf16.msra.mxu0 0
        %718 = vmatprep.subr.bf16.mxu0 0
        %719 = vmatpush1.bf16.msra.mxu0 0
        %720 = vmatprep.subr.bf16.mxu0 0
        %721 = vmatpush1.bf16.msra.mxu0 0
        %722 = vmatprep.subr.bf16.mxu0 0
        %723 = vmatpush1.bf16.msra.mxu0 0
        %724 = vmatprep.subr.bf16.mxu0 0
        %725 = vmatpush1.bf16.msra.mxu0 0
        %726 = vmatprep.subr.bf16.mxu0 0
        %727 = vmatpush1.bf16.msra.mxu0 0
        %728 = vmatprep.subr.bf16.mxu0 0
        %729 = vmatpush1.bf16.msra.mxu0 0
        %730 = vmatprep.subr.bf16.mxu0 0
        %731 = vmatpush1.bf16.msra.mxu0 0
        %732 = vmatprep.subr.bf16.mxu0 0
        %733 = vmatpush1.bf16.msra.mxu0 0
        %734 = vmatprep.subr.bf16.mxu0 0
        %735 = vmatpush1.bf16.msra.mxu0 0
        %736 = vmatprep.subr.bf16.mxu0 0
        %737 = vmatpush1.bf16.msra.mxu0 0
        %738 = vmatprep.subr.bf16.mxu0 0
        %739 = vmatpush1.bf16.msra.mxu0 0
        %740 = vmatprep.mubr.bf16.mxu0 0
        %741 = vmatmul.mubr.bf16.gmra.mrb[0].mxu0 %v656
        %v742 = vpop.f32.mrb[0].mxu0
        %v743 = vadd.f32 0.0, %v742
        %v744 = vpop.f32.mrb[0].mxu0
        %v745 = vpop.f32.mrb[0].mxu0
        %v746 = vpop.f32.mrb[0].mxu0
        %747 = vdwg.mxu0
        %v748 = vadd.f32 %v638, %v702
        %v749 = vadd.f32 %v639, %v704
        %v750 = vadd.f32 %v640, %v743
        %s751 = scalar_lea.vmem %s1, 20
        %v752 = vld [vmem:[%s751] sm:$0xf]
        %753 = vrot.lane.b32.xlu0 %v211, 108
        %v754 = vpop.permute.xlu0 %753
        %755 = vrot.lane.b32.xlu0 %v219, 108
        %v756 = vpop.permute.xlu0 %755
        %757 = vrot.lane.b32.xlu0 %v218, 108
        %v758 = vpop.permute.xlu0 %757
        %759 = vrot.lane.b32.xlu0 %v220, 108
        %v760 = vpop.permute.xlu0 %759
        %vm761 = vcmask 883712
        %v762 = vsel %vm761, %v754, %v756
        %v763 = vsel %vm761, %v756, %v758
        %v764 = vsel %vm761, %v758, %v760
        %v766 = vsel %vm233, %v752, 0
        %v769 = vsel %vm237, %v762, 0
        %v772 = vsel %vm237, %v763, 0
        %v775 = vsel %vm237, %v764, 0
        %777 = vmatprep.subr.bf16.mxu0 %v772
        %778 = vmatpush1.bf16.msra.mxu0 %v769
        %779 = vmatprep.subr.bf16.mxu0 0
        %780 = vmatpush1.bf16.msra.mxu0 0
        %781 = vmatprep.subr.bf16.mxu0 0
        %782 = vmatpush1.bf16.msra.mxu0 0
        %783 = vmatprep.subr.bf16.mxu0 0
        %784 = vmatpush1.bf16.msra.mxu0 0
        %785 = vmatprep.subr.bf16.mxu0 0
        %786 = vmatpush1.bf16.msra.mxu0 0
        %787 = vmatprep.subr.bf16.mxu0 0
        %788 = vmatpush1.bf16.msra.mxu0 0
        %789 = vmatprep.subr.bf16.mxu0 0
        %790 = vmatpush1.bf16.msra.mxu0 0
        %791 = vmatprep.subr.bf16.mxu0 0
        %792 = vmatpush1.bf16.msra.mxu0 0
        %793 = vmatprep.subr.bf16.mxu0 0
        %794 = vmatpush1.bf16.msra.mxu0 0
        %795 = vmatprep.subr.bf16.mxu0 0
        %796 = vmatpush1.bf16.msra.mxu0 0
        %797 = vmatprep.subr.bf16.mxu0 0
        %798 = vmatpush1.bf16.msra.mxu0 0
        %799 = vmatprep.subr.bf16.mxu0 0
        %800 = vmatpush1.bf16.msra.mxu0 0
        %801 = vmatprep.subr.bf16.mxu0 0
        %802 = vmatpush1.bf16.msra.mxu0 0
        %803 = vmatprep.subr.bf16.mxu0 0
        %804 = vmatpush1.bf16.msra.mxu0 0
        %805 = vmatprep.subr.bf16.mxu0 0
        %806 = vmatpush1.bf16.msra.mxu0 0
        %807 = vmatprep.subr.bf16.mxu0 0
        %808 = vmatpush1.bf16.msra.mxu0 0
        %809 = vmatprep.mubr.bf16.mxu0 0
        %810 = vmatmul.mubr.bf16.gmra.mrb[0].mxu0 %v766
        %v811 = vpop.f32.mrb[0].mxu0
        %v812 = vadd.f32 0.0, %v811
        %v813 = vpop.f32.mrb[0].mxu0
        %v814 = vadd.f32 0.0, %v813
        %v815 = vpop.f32.mrb[0].mxu0
        %v816 = vpop.f32.mrb[0].mxu0
        %817 = vdwg.mxu0
        %818 = vmatprep.subr.bf16.mxu0 0
        %819 = vmatpush1.bf16.msra.mxu0 %v775
        %820 = vmatprep.subr.bf16.mxu0 0
        %821 = vmatpush1.bf16.msra.mxu0 0
        %822 = vmatprep.subr.bf16.mxu0 0
        %823 = vmatpush1.bf16.msra.mxu0 0
        %824 = vmatprep.subr.bf16.mxu0 0
        %825 = vmatpush1.bf16.msra.mxu0 0
        %826 = vmatprep.subr.bf16.mxu0 0
        %827 = vmatpush1.bf16.msra.mxu0 0
        %828 = vmatprep.subr.bf16.mxu0 0
        %829 = vmatpush1.bf16.msra.mxu0 0
        %830 = vmatprep.subr.bf16.mxu0 0
        %831 = vmatpush1.bf16.msra.mxu0 0
        %832 = vmatprep.subr.bf16.mxu0 0
        %833 = vmatpush1.bf16.msra.mxu0 0
        %834 = vmatprep.subr.bf16.mxu0 0
        %835 = vmatpush1.bf16.msra.mxu0 0
        %836 = vmatprep.subr.bf16.mxu0 0
        %837 = vmatpush1.bf16.msra.mxu0 0
        %838 = vmatprep.subr.bf16.mxu0 0
        %839 = vmatpush1.bf16.msra.mxu0 0
        %840 = vmatprep.subr.bf16.mxu0 0
        %841 = vmatpush1.bf16.msra.mxu0 0
        %842 = vmatprep.subr.bf16.mxu0 0
        %843 = vmatpush1.bf16.msra.mxu0 0
        %844 = vmatprep.subr.bf16.mxu0 0
        %845 = vmatpush1.bf16.msra.mxu0 0
        %846 = vmatprep.subr.bf16.mxu0 0
        %847 = vmatpush1.bf16.msra.mxu0 0
        %848 = vmatprep.subr.bf16.mxu0 0
        %849 = vmatpush1.bf16.msra.mxu0 0
        %850 = vmatprep.mubr.bf16.mxu0 0
        %851 = vmatmul.mubr.bf16.gmra.mrb[0].mxu0 %v766
        %v852 = vpop.f32.mrb[0].mxu0
        %v853 = vadd.f32 0.0, %v852
        %v854 = vpop.f32.mrb[0].mxu0
        %v855 = vpop.f32.mrb[0].mxu0
        %v856 = vpop.f32.mrb[0].mxu0
        %857 = vdwg.mxu0
        %v858 = vadd.f32 %v748, %v812
        %v859 = vadd.f32 %v749, %v814
        %v860 = vadd.f32 %v750, %v853
        %s861 = scalar_lea.vmem %s1, 24
        %v862 = vld [vmem:[%s861] sm:$0xf]
        %863 = vrot.lane.b32.xlu0 %v211, 92
        %v864 = vpop.permute.xlu0 %863
        %865 = vrot.lane.b32.xlu0 %v219, 92
        %v866 = vpop.permute.xlu0 %865
        %867 = vrot.lane.b32.xlu0 %v218, 92
        %v868 = vpop.permute.xlu0 %867
        %869 = vrot.lane.b32.xlu0 %v220, 92
        %v870 = vpop.permute.xlu0 %869
        %vm871 = vcmask 752640
        %v872 = vsel %vm871, %v864, %v866
        %v873 = vsel %vm871, %v866, %v868
        %v874 = vsel %vm871, %v868, %v870
        %v876 = vsel %vm233, %v862, 0
        %v879 = vsel %vm237, %v872, 0
        %v882 = vsel %vm237, %v873, 0
        %v885 = vsel %vm237, %v874, 0
        %887 = vmatprep.subr.bf16.mxu0 %v882
        %888 = vmatpush1.bf16.msra.mxu0 %v879
        %889 = vmatprep.subr.bf16.mxu0 0
        %890 = vmatpush1.bf16.msra.mxu0 0
        %891 = vmatprep.subr.bf16.mxu0 0
        %892 = vmatpush1.bf16.msra.mxu0 0
        %893 = vmatprep.subr.bf16.mxu0 0
        %894 = vmatpush1.bf16.msra.mxu0 0
        %895 = vmatprep.subr.bf16.mxu0 0
        %896 = vmatpush1.bf16.msra.mxu0 0
        %897 = vmatprep.subr.bf16.mxu0 0
        %898 = vmatpush1.bf16.msra.mxu0 0
        %899 = vmatprep.subr.bf16.mxu0 0
        %900 = vmatpush1.bf16.msra.mxu0 0
        %901 = vmatprep.subr.bf16.mxu0 0
        %902 = vmatpush1.bf16.msra.mxu0 0
        %903 = vmatprep.subr.bf16.mxu0 0
        %904 = vmatpush1.bf16.msra.mxu0 0
        %905 = vmatprep.subr.bf16.mxu0 0
        %906 = vmatpush1.bf16.msra.mxu0 0
        %907 = vmatprep.subr.bf16.mxu0 0
        %908 = vmatpush1.bf16.msra.mxu0 0
        %909 = vmatprep.subr.bf16.mxu0 0
        %910 = vmatpush1.bf16.msra.mxu0 0
        %911 = vmatprep.subr.bf16.mxu0 0
        %912 = vmatpush1.bf16.msra.mxu0 0
        %913 = vmatprep.subr.bf16.mxu0 0
        %914 = vmatpush1.bf16.msra.mxu0 0
        %915 = vmatprep.subr.bf16.mxu0 0
        %916 = vmatpush1.bf16.msra.mxu0 0
        %917 = vmatprep.subr.bf16.mxu0 0
        %918 = vmatpush1.bf16.msra.mxu0 0
        %919 = vmatprep.mubr.bf16.mxu0 0
        %920 = vmatmul.mubr.bf16.gmra.mrb[0].mxu0 %v876
        %v921 = vpop.f32.mrb[0].mxu0
        %v922 = vadd.f32 0.0, %v921
        %v923 = vpop.f32.mrb[0].mxu0
        %v924 = vadd.f32 0.0, %v923
        %v925 = vpop.f32.mrb[0].mxu0
        %v926 = vpop.f32.mrb[0].mxu0
        %927 = vdwg.mxu0
        %928 = vmatprep.subr.bf16.mxu0 0
        %929 = vmatpush1.bf16.msra.mxu0 %v885
        %930 = vmatprep.subr.bf16.mxu0 0
        %931 = vmatpush1.bf16.msra.mxu0 0
        %932 = vmatprep.subr.bf16.mxu0 0
        %933 = vmatpush1.bf16.msra.mxu0 0
        %934 = vmatprep.subr.bf16.mxu0 0
        %935 = vmatpush1.bf16.msra.mxu0 0
        %936 = vmatprep.subr.bf16.mxu0 0
        %937 = vmatpush1.bf16.msra.mxu0 0
        %938 = vmatprep.subr.bf16.mxu0 0
        %939 = vmatpush1.bf16.msra.mxu0 0
        %940 = vmatprep.subr.bf16.mxu0 0
        %941 = vmatpush1.bf16.msra.mxu0 0
        %942 = vmatprep.subr.bf16.mxu0 0
        %943 = vmatpush1.bf16.msra.mxu0 0
        %944 = vmatprep.subr.bf16.mxu0 0
        %945 = vmatpush1.bf16.msra.mxu0 0
        %946 = vmatprep.subr.bf16.mxu0 0
        %947 = vmatpush1.bf16.msra.mxu0 0
        %948 = vmatprep.subr.bf16.mxu0 0
        %949 = vmatpush1.bf16.msra.mxu0 0
        %950 = vmatprep.subr.bf16.mxu0 0
        %951 = vmatpush1.bf16.msra.mxu0 0
        %952 = vmatprep.subr.bf16.mxu0 0
        %953 = vmatpush1.bf16.msra.mxu0 0
        %954 = vmatprep.subr.bf16.mxu0 0
        %955 = vmatpush1.bf16.msra.mxu0 0
        %956 = vmatprep.subr.bf16.mxu0 0
        %957 = vmatpush1.bf16.msra.mxu0 0
        %958 = vmatprep.subr.bf16.mxu0 0
        %959 = vmatpush1.bf16.msra.mxu0 0
        %960 = vmatprep.mubr.bf16.mxu0 0
        %961 = vmatmul.mubr.bf16.gmra.mrb[0].mxu0 %v876
        %v962 = vpop.f32.mrb[0].mxu0
        %v963 = vadd.f32 0.0, %v962
        %v964 = vpop.f32.mrb[0].mxu0
        %v965 = vpop.f32.mrb[0].mxu0
        %v966 = vpop.f32.mrb[0].mxu0
        %967 = vdwg.mxu0
        %v968 = vadd.f32 %v858, %v922
        %v969 = vadd.f32 %v859, %v924
        %v970 = vadd.f32 %v860, %v963
        %s971 = scalar_lea.vmem %s1, 28
        %v972 = vld [vmem:[%s971] sm:$0xf]
        %973 = vrot.lane.b32.xlu0 %v211, 91
        %v974 = vpop.permute.xlu0 %973
        %975 = vrot.lane.b32.xlu0 %v219, 91
        %v976 = vpop.permute.xlu0 %975
        %977 = vrot.lane.b32.xlu0 %v218, 91
        %v978 = vpop.permute.xlu0 %977
        %979 = vrot.lane.b32.xlu0 %v220, 91
        %v980 = vpop.permute.xlu0 %979
        %vm981 = vcmask 744448
        %v982 = vsel %vm981, %v974, %v976
        %v983 = vsel %vm981, %v976, %v978
        %v984 = vsel %vm981, %v978, %v980
        %v986 = vsel %vm233, %v972, 0
        %v989 = vsel %vm237, %v982, 0
        %v992 = vsel %vm237, %v983, 0
        %v995 = vsel %vm237, %v984, 0
        %997 = vmatprep.subr.bf16.mxu0 %v992
        %998 = vmatpush1.bf16.msra.mxu0 %v989
        %999 = vmatprep.subr.bf16.mxu0 0
        %1000 = vmatpush1.bf16.msra.mxu0 0
        %1001 = vmatprep.subr.bf16.mxu0 0
        %1002 = vmatpush1.bf16.msra.mxu0 0
        %1003 = vmatprep.subr.bf16.mxu0 0
        %1004 = vmatpush1.bf16.msra.mxu0 0
        %1005 = vmatprep.subr.bf16.mxu0 0
        %1006 = vmatpush1.bf16.msra.mxu0 0
        %1007 = vmatprep.subr.bf16.mxu0 0
        %1008 = vmatpush1.bf16.msra.mxu0 0
        %1009 = vmatprep.subr.bf16.mxu0 0
        %1010 = vmatpush1.bf16.msra.mxu0 0
        %1011 = vmatprep.subr.bf16.mxu0 0
        %1012 = vmatpush1.bf16.msra.mxu0 0
        %1013 = vmatprep.subr.bf16.mxu0 0
        %1014 = vmatpush1.bf16.msra.mxu0 0
        %1015 = vmatprep.subr.bf16.mxu0 0
        %1016 = vmatpush1.bf16.msra.mxu0 0
        %1017 = vmatprep.subr.bf16.mxu0 0
        %1018 = vmatpush1.bf16.msra.mxu0 0
        %1019 = vmatprep.subr.bf16.mxu0 0
        %1020 = vmatpush1.bf16.msra.mxu0 0
        %1021 = vmatprep.subr.bf16.mxu0 0
        %1022 = vmatpush1.bf16.msra.mxu0 0
        %1023 = vmatprep.subr.bf16.mxu0 0
        %1024 = vmatpush1.bf16.msra.mxu0 0
        %1025 = vmatprep.subr.bf16.mxu0 0
        %1026 = vmatpush1.bf16.msra.mxu0 0
        %1027 = vmatprep.subr.bf16.mxu0 0
        %1028 = vmatpush1.bf16.msra.mxu0 0
        %1029 = vmatprep.mubr.bf16.mxu0 0
        %1030 = vmatmul.mubr.bf16.gmra.mrb[0].mxu0 %v986
        %v1031 = vpop.f32.mrb[0].mxu0
        %v1032 = vadd.f32 0.0, %v1031
        %v1033 = vpop.f32.mrb[0].mxu0
        %v1034 = vadd.f32 0.0, %v1033
        %v1035 = vpop.f32.mrb[0].mxu0
        %v1036 = vpop.f32.mrb[0].mxu0
        %1037 = vdwg.mxu0
        %1038 = vmatprep.subr.bf16.mxu0 0
        %1039 = vmatpush1.bf16.msra.mxu0 %v995
        %1040 = vmatprep.subr.bf16.mxu0 0
        %1041 = vmatpush1.bf16.msra.mxu0 0
        %1042 = vmatprep.subr.bf16.mxu0 0
        %1043 = vmatpush1.bf16.msra.mxu0 0
        %1044 = vmatprep.subr.bf16.mxu0 0
        %1045 = vmatpush1.bf16.msra.mxu0 0
        %1046 = vmatprep.subr.bf16.mxu0 0
        %1047 = vmatpush1.bf16.msra.mxu0 0
        %1048 = vmatprep.subr.bf16.mxu0 0
        %1049 = vmatpush1.bf16.msra.mxu0 0
        %1050 = vmatprep.subr.bf16.mxu0 0
        %1051 = vmatpush1.bf16.msra.mxu0 0
        %1052 = vmatprep.subr.bf16.mxu0 0
        %1053 = vmatpush1.bf16.msra.mxu0 0
        %1054 = vmatprep.subr.bf16.mxu0 0
        %1055 = vmatpush1.bf16.msra.mxu0 0
        %1056 = vmatprep.subr.bf16.mxu0 0
        %1057 = vmatpush1.bf16.msra.mxu0 0
        %1058 = vmatprep.subr.bf16.mxu0 0
        %1059 = vmatpush1.bf16.msra.mxu0 0
        %1060 = vmatprep.subr.bf16.mxu0 0
        %1061 = vmatpush1.bf16.msra.mxu0 0
        %1062 = vmatprep.subr.bf16.mxu0 0
        %1063 = vmatpush1.bf16.msra.mxu0 0
        %1064 = vmatprep.subr.bf16.mxu0 0
        %1065 = vmatpush1.bf16.msra.mxu0 0
        %1066 = vmatprep.subr.bf16.mxu0 0
        %1067 = vmatpush1.bf16.msra.mxu0 0
        %1068 = vmatprep.subr.bf16.mxu0 0
        %1069 = vmatpush1.bf16.msra.mxu0 0
        %1070 = vmatprep.mubr.bf16.mxu0 0
        %1071 = vmatmul.mubr.bf16.gmra.mrb[0].mxu0 %v986
        %v1072 = vpop.f32.mrb[0].mxu0
        %v1073 = vadd.f32 0.0, %v1072
        %v1074 = vpop.f32.mrb[0].mxu0
        %v1075 = vpop.f32.mrb[0].mxu0
        %v1076 = vpop.f32.mrb[0].mxu0
        %1077 = vdwg.mxu0
        %v1078 = vadd.f32 %v968, %v1032
        %v1079 = vadd.f32 %v969, %v1034
        %v1080 = vadd.f32 %v970, %v1073
        %s1081 = scalar_lea.vmem %s1, 32
        %v1082 = vld [vmem:[%s1081] sm:$0xf]
        %1083 = vrot.lane.b32.xlu0 %v211, 90
        %v1084 = vpop.permute.xlu0 %1083
        %1085 = vrot.lane.b32.xlu0 %v219, 90
        %v1086 = vpop.permute.xlu0 %1085
        %1087 = vrot.lane.b32.xlu0 %v218, 90
        %v1088 = vpop.permute.xlu0 %1087
        %1089 = vrot.lane.b32.xlu0 %v220, 90
        %v1090 = vpop.permute.xlu0 %1089
        %vm1091 = vcmask 736256
        %v1092 = vsel %vm1091, %v1084, %v1086
        %v1093 = vsel %vm1091, %v1086, %v1088
        %v1094 = vsel %vm1091, %v1088, %v1090
        %v1096 = vsel %vm233, %v1082, 0
        %v1099 = vsel %vm237, %v1092, 0
        %v1102 = vsel %vm237, %v1093, 0
        %v1105 = vsel %vm237, %v1094, 0
        %1107 = vmatprep.subr.bf16.mxu0 %v1102
        %1108 = vmatpush1.bf16.msra.mxu0 %v1099
        %1109 = vmatprep.subr.bf16.mxu0 0
        %1110 = vmatpush1.bf16.msra.mxu0 0
        %1111 = vmatprep.subr.bf16.mxu0 0
        %1112 = vmatpush1.bf16.msra.mxu0 0
        %1113 = vmatprep.subr.bf16.mxu0 0
        %1114 = vmatpush1.bf16.msra.mxu0 0
        %1115 = vmatprep.subr.bf16.mxu0 0
        %1116 = vmatpush1.bf16.msra.mxu0 0
        %1117 = vmatprep.subr.bf16.mxu0 0
        %1118 = vmatpush1.bf16.msra.mxu0 0
        %1119 = vmatprep.subr.bf16.mxu0 0
        %1120 = vmatpush1.bf16.msra.mxu0 0
        %1121 = vmatprep.subr.bf16.mxu0 0
        %1122 = vmatpush1.bf16.msra.mxu0 0
        %1123 = vmatprep.subr.bf16.mxu0 0
        %1124 = vmatpush1.bf16.msra.mxu0 0
        %1125 = vmatprep.subr.bf16.mxu0 0
        %1126 = vmatpush1.bf16.msra.mxu0 0
        %1127 = vmatprep.subr.bf16.mxu0 0
        %1128 = vmatpush1.bf16.msra.mxu0 0
        %1129 = vmatprep.subr.bf16.mxu0 0
        %1130 = vmatpush1.bf16.msra.mxu0 0
        %1131 = vmatprep.subr.bf16.mxu0 0
        %1132 = vmatpush1.bf16.msra.mxu0 0
        %1133 = vmatprep.subr.bf16.mxu0 0
        %1134 = vmatpush1.bf16.msra.mxu0 0
        %1135 = vmatprep.subr.bf16.mxu0 0
        %1136 = vmatpush1.bf16.msra.mxu0 0
        %1137 = vmatprep.subr.bf16.mxu0 0
        %1138 = vmatpush1.bf16.msra.mxu0 0
        %1139 = vmatprep.mubr.bf16.mxu0 0
        %1140 = vmatmul.mubr.bf16.gmra.mrb[0].mxu0 %v1096
        %v1141 = vpop.f32.mrb[0].mxu0
        %v1142 = vadd.f32 0.0, %v1141
        %v1143 = vpop.f32.mrb[0].mxu0
        %v1144 = vadd.f32 0.0, %v1143
        %v1145 = vpop.f32.mrb[0].mxu0
        %v1146 = vpop.f32.mrb[0].mxu0
        %1147 = vdwg.mxu0
        %1148 = vmatprep.subr.bf16.mxu0 0
        %1149 = vmatpush1.bf16.msra.mxu0 %v1105
        %1150 = vmatprep.subr.bf16.mxu0 0
        %1151 = vmatpush1.bf16.msra.mxu0 0
        %1152 = vmatprep.subr.bf16.mxu0 0
        %1153 = vmatpush1.bf16.msra.mxu0 0
        %1154 = vmatprep.subr.bf16.mxu0 0
        %1155 = vmatpush1.bf16.msra.mxu0 0
        %1156 = vmatprep.subr.bf16.mxu0 0
        %1157 = vmatpush1.bf16.msra.mxu0 0
        %1158 = vmatprep.subr.bf16.mxu0 0
        %1159 = vmatpush1.bf16.msra.mxu0 0
        %1160 = vmatprep.subr.bf16.mxu0 0
        %1161 = vmatpush1.bf16.msra.mxu0 0
        %1162 = vmatprep.subr.bf16.mxu0 0
        %1163 = vmatpush1.bf16.msra.mxu0 0
        %1164 = vmatprep.subr.bf16.mxu0 0
        %1165 = vmatpush1.bf16.msra.mxu0 0
        %1166 = vmatprep.subr.bf16.mxu0 0
        %1167 = vmatpush1.bf16.msra.mxu0 0
        %1168 = vmatprep.subr.bf16.mxu0 0
        %1169 = vmatpush1.bf16.msra.mxu0 0
        %1170 = vmatprep.subr.bf16.mxu0 0
        %1171 = vmatpush1.bf16.msra.mxu0 0
        %1172 = vmatprep.subr.bf16.mxu0 0
        %1173 = vmatpush1.bf16.msra.mxu0 0
        %1174 = vmatprep.subr.bf16.mxu0 0
        %1175 = vmatpush1.bf16.msra.mxu0 0
        %1176 = vmatprep.subr.bf16.mxu0 0
        %1177 = vmatpush1.bf16.msra.mxu0 0
        %1178 = vmatprep.subr.bf16.mxu0 0
        %1179 = vmatpush1.bf16.msra.mxu0 0
        %1180 = vmatprep.mubr.bf16.mxu0 0
        %1181 = vmatmul.mubr.bf16.gmra.mrb[0].mxu0 %v1096
        %v1182 = vpop.f32.mrb[0].mxu0
        %v1183 = vadd.f32 0.0, %v1182
        %v1184 = vpop.f32.mrb[0].mxu0
        %v1185 = vpop.f32.mrb[0].mxu0
        %v1186 = vpop.f32.mrb[0].mxu0
        %1187 = vdwg.mxu0
        %v1188 = vadd.f32 %v1078, %v1142
        %v1189 = vadd.f32 %v1079, %v1144
        %v1190 = vadd.f32 %v1080, %v1183
        %v1191 = vld [vmem:[%s2] sm:$0xff]
        %1193 = vset.pattern.permute.xlu0 0
        %1194 = vperm.xlu0 %1193, %v1191
        %v1195 = vpop.permute.xlu0 %1194
        %v1197 = vadd.f32 %v1188, %v1195
        %v1198 = vadd.f32 %v1189, %v1195
        %v1199 = vadd.f32 %v1190, %v1195
        %1200 = vst [vmem:[%s187] sm:$0xff] %v1197
        %1201 = vst [vmem:[%s187 + $0x8] sm:$0xff] %v1198
        %1202 = vst [vmem:[%s187 + $0x10] sm:$0xff] %v1199
        %s1203 = sand.u32 %s109, 1
        %s1204 = scalar_lea.sflag [#allocation3], %s1203
        %s1205 = sand.u32 %s109, 1
        %s1206 = smul.addr %s1205, 24
        %s1207 = scalar_lea.vmem [#allocation2], %s1206
        // Predicated region
        $region33: #{tpu_custom_call.1} parent=31 // pred_check
          %p1208 = pneg %p119
        $region34: #{tpu_custom_call.1} parent=31 // pred_check_branch
          %1210 = sbr.rel (%p1208) target = $region36
        $region35: #{tpu_custom_call.1} parent=31 // pred_region
          %s1211 = smul.u32 3, %s22
          %s1213 = ssub.s32 384, 384
          %1214 = vsyncadd %s1204, %s1213
          %s1215 = smul.addr %s21, 3
          %s1216 = sadd.s32 %s1211, %s1215
          %s1217 = smul.addr %s1216, 128
          %s1218 = scalar_lea.hbm %s3, %s1217
          %s1220 = sshll.u32 %s1207, 4
          %s1221 = int_to_ptr.vmem [resolvable:$true] %s1220
          %1223 = dma.vmem_to_hbm [thread:$0]  %s1221, 384, %s1218, %s1204
        $region36: #{tpu_custom_call.1} parent=31 // pred_fallthru
          _
      $region32: #{tpu_custom_call.1} parent=5 // pred_fallthru
        _
      %p1224 = scmp.le.s32.totalorder 2, %s12
      // Predicated region
      $region37: #{tpu_custom_call.1} parent=5 // pred_check
        %p1225 = pneg %p1224
      $region38: #{tpu_custom_call.1} parent=5 // pred_check_branch
        %1227 = sbr.rel (%p1225) target = $region40
      $region39: #{tpu_custom_call.1} parent=5 // pred_region
        %s1228 = ssub.s32 %s12, 2
        // Predicated region
        $region41: #{tpu_custom_call.1} parent=39 // pred_check
          %p1229 = pneg %p125
        $region42: #{tpu_custom_call.1} parent=39 // pred_check_branch
          %1231 = sbr.rel (%p1229) target = $region44
        $region43: #{tpu_custom_call.1} parent=39 // pred_region
          %s1232 = sand.u32 %s110, 1
          %s1233 = scalar_lea.sflag [#allocation3], %s1232
          %s1234 = sand.u32 %s110, 1
          %s1235 = smul.addr %s1234, 24
          %s1236 = scalar_lea.vmem [#allocation2], %s1235
          %1237 = dma.done %s1233, 384
        $region44: #{tpu_custom_call.1} parent=39 // pred_fallthru
          _
      $region40: #{tpu_custom_call.1} parent=5 // pred_fallthru
        _
    $region6: #{tpu_custom_call.1} parent=1 // loop_footer
      %s16 = sadd.s32 1, %s12
    $region7: #{tpu_custom_call.1} parent=1 // loop_footer_branch
      %11 = sbr.rel target = $region3
    $region8: #{tpu_custom_call.1} parent=1 // loop_exit
      _
    %1238 = vsyncpa [#allocation3], 1
    %s1239 = scalar_lea.sflag [#allocation3], 1
    %1240 = vsyncpa %s1239, 1

</llo_original>
